<compile_context>
chip_gen: v5e
topology: v5e:2x2
jax: 0.10.0
libtpu: 0.0.40
codegen_flags: <defaults>
</compile_context>

<pallas_src>
import functools

import jax
import jax.numpy as jnp
from jax.experimental import pallas as pl
from jax.experimental.pallas import tpu as pltpu

_LANE = 128
_SUBLANE = 8


def _round_up(x, m):
    return ((x + m - 1) // m) * m


def _vmem_limit_for(est_bytes):
    """Override the scoped-VMEM default only when the tile footprint clearly needs it."""
    if est_bytes <= 12 * 1024 * 1024:
        return None
    return int(min(2 * est_bytes, 64 * 1024 * 1024))


# --------------------------------------------------------------------------------------
# Kernels
# --------------------------------------------------------------------------------------
def lstm_step_kernel(x_ref, h_ref, c_ref, wx_ref, wh_ref, b_ref, h_out_ref, c_out_ref):
    """One (batch tile, gate-column tile) block of a single LSTMCell step."""
    x = x_ref[...]                                   # (TM, In_pad), param dtype
    h = h_ref[...].astype(wh_ref.dtype)              # state kept f32; cast at the dot

    def gate_pre(gi):                                # PyTorch gate order: i, f, g, o
        return (jnp.dot(x, wx_ref[gi], preferred_element_type=jnp.float32)
                + jnp.dot(h, wh_ref[gi], preferred_element_type=jnp.float32)
                + b_ref[gi])                         # (TM, TN) f32

    i_g = jax.nn.sigmoid(gate_pre(0))
    f_g = jax.nn.sigmoid(gate_pre(1))
    g_g = jnp.tanh(gate_pre(2))
    o_g = jax.nn.sigmoid(gate_pre(3))

    c_new = f_g * c_ref[...] + i_g * g_g
    h_new = o_g * jnp.tanh(c_new)
    c_out_ref[...] = c_new
    h_out_ref[...] = h_new


def lstm_seq_kernel(x_ref, h0_ref, c0_ref, wx_ref, wh_ref, b_ref,
                    hseq_ref, hfin_ref, cfin_ref, h_sc, c_sc):
    """Fused time loop: weights VMEM-resident (constant block index), h/c in VMEM scratch."""
    t = pl.program_id(0)

    @pl.when(t == 0)
    def _init():
        h_sc[...] = h0_ref[...]
        c_sc[...] = c0_ref[...]

    x = x_ref[0]                                      # (B_pad, In_pad)
    h = h_sc[...].astype(wh_ref.dtype)

    def gate_pre(gi):
        return (jnp.dot(x, wx_ref[gi], preferred_element_type=jnp.float32)
                + jnp.dot(h, wh_ref[gi], preferred_element_type=jnp.float32)
                + b_ref[gi])

    i_g = jax.nn.sigmoid(gate_pre(0))
    f_g = jax.nn.sigmoid(gate_pre(1))
    g_g = jnp.tanh(gate_pre(2))
    o_g = jax.nn.sigmoid(gate_pre(3))

    c_new = f_g * c_sc[...] + i_g * g_g
    h_new = o_g * jnp.tanh(c_new)
    c_sc[...] = c_new
    h_sc[...] = h_new

    hseq_ref[...] = h_new[None]                       # per-step h output
    hfin_ref[...] = h_new                             # resident; flushed once at grid end
    cfin_ref[...] = c_new


# --------------------------------------------------------------------------------------
# Jitted wrappers (single dispatch per call; donation makes the state update zero-copy)
# --------------------------------------------------------------------------------------
@functools.partial(jax.jit,
                   static_argnames=("b_real", "h_real", "in_real", "b_pad", "in_pad",
                                    "tm", "tn", "vmem_limit"),
                   donate_argnums=(2,))              # donate c (aliased to c_new below)
def _lstm_step_pallas(x, h, c, wx, wh, b, *, b_real, h_real, in_real,
                      b_pad, in_pad, tm, tn, vmem_limit):
    hp = c.shape[-1]
    xp = jnp.zeros((b_pad, in_pad), wx.dtype)
    xp = xp.at[:b_real, :in_real].set(x.astype(wx.dtype))   # fused into the dispatch

    grid = (b_pad // tm, hp // tn)
    h_new, c_new = pl.pallas_call(
        lstm_step_kernel,
        out_shape=(jax.ShapeDtypeStruct((b_pad, hp), jnp.float32),
                   jax.ShapeDtypeStruct((b_pad, hp), jnp.float32)),
        grid_spec=pltpu.PrefetchScalarGridSpec(
            num_scalar_prefetch=0,
            grid=grid,
            in_specs=[
                pl.BlockSpec((tm, in_pad), lambda i, n: (i, 0)),      # x tile
                pl.BlockSpec((tm, hp), lambda i, n: (i, 0)),          # h state (full H)
                pl.BlockSpec((tm, tn), lambda i, n: (i, n)),          # c state tile
                pl.BlockSpec((4, in_pad, tn), lambda i, n: (0, 0, n)),  # W_ih (gate-major)
                pl.BlockSpec((4, hp, tn), lambda i, n: (0, 0, n)),      # W_hh (gate-major)
                pl.BlockSpec((4, 1, tn), lambda i, n: (0, 0, n)),       # fused bias
            ],
            out_specs=(
                pl.BlockSpec((tm, tn), lambda i, n: (i, n)),          # h_new
                pl.BlockSpec((tm, tn), lambda i, n: (i, n)),          # c_new
            ),
        ),
        compiler_params=pltpu.CompilerParams(
            dimension_semantics=("parallel", "parallel"),
            vmem_limit_bytes=vmem_limit),
        input_output_aliases={2: 1},                                  # c in -> c_new out
    )(xp, h, c, wx, wh, b)
    return h_new, c_new, h_new[:b_real, :h_real]


@functools.partial(jax.jit,
                   static_argnames=("b_real", "h_real", "in_real", "b_pad", "in_pad",
                                    "vmem_limit"),
                   donate_argnums=(1, 2))            # donate h, c (aliased to finals)
def _lstm_seq_pallas(xs, h, c, wx, wh, b, *, b_real, h_real, in_real,
                     b_pad, in_pad, vmem_limit):
    T = xs.shape[0]
    hp = c.shape[-1]
    xp = jnp.zeros((T, b_pad, in_pad), wx.dtype)
    xp = xp.at[:, :b_real, :in_real].set(xs.astype(wx.dtype))

    h_seq, h_fin, c_fin = pl.pallas_call(
        lstm_seq_kernel,
        out_shape=(jax.ShapeDtypeStruct((T, b_pad, hp), jnp.float32),
                   jax.ShapeDtypeStruct((b_pad, hp), jnp.float32),
                   jax.ShapeDtypeStruct((b_pad, hp), jnp.float32)),
        grid_spec=pltpu.PrefetchScalarGridSpec(
            num_scalar_prefetch=0,
            grid=(T,),
            in_specs=[
                pl.BlockSpec((1, b_pad, in_pad), lambda t: (t, 0, 0)),   # x_t
                pl.BlockSpec((b_pad, hp), lambda t: (0, 0)),             # h0 (fetched once)
                pl.BlockSpec((b_pad, hp), lambda t: (0, 0)),             # c0 (fetched once)
                pl.BlockSpec((4, in_pad, hp), lambda t: (0, 0, 0)),      # W_ih resident
                pl.BlockSpec((4, hp, hp), lambda t: (0, 0, 0)),          # W_hh resident
                pl.BlockSpec((4, 1, hp), lambda t: (0, 0, 0)),           # bias resident
            ],
            out_specs=(
                pl.BlockSpec((1, b_pad, hp), lambda t: (t, 0, 0)),       # h per step
                pl.BlockSpec((b_pad, hp), lambda t: (0, 0)),             # final h
                pl.BlockSpec((b_pad, hp), lambda t: (0, 0)),             # final c
            ),
            scratch_shapes=[pltpu.VMEM((b_pad, hp), jnp.float32),        # h carry
                            pltpu.VMEM((b_pad, hp), jnp.float32)],       # c carry
        ),
        compiler_params=pltpu.CompilerParams(
            dimension_semantics=("arbitrary",),
            vmem_limit_bytes=vmem_limit),
        input_output_aliases={1: 1, 2: 2},                               # h0->h_fin, c0->c_fin
    )(xp, h, c, wx, wh, b)
    return h_seq[:, :b_real, :h_real], h_fin, c_fin


# --------------------------------------------------------------------------------------
# Module
# --------------------------------------------------------------------------------------
class StatefulLSTM:
    """JAX/Pallas port of the PyTorch StatefulLSTM (one LSTMCell step per __call__)."""

    def __init__(self, in_size, out_size, key, param_dtype=jnp.bfloat16):
        self.in_size = in_size
        self.out_size = out_size
        self.param_dtype = param_dtype               # bf16 default; f32 = exact PyTorch math

        # PyTorch LSTMCell default init: U(-1/sqrt(H), 1/sqrt(H)).
        bound = 1.0 / (out_size ** 0.5)
        k1, k2, k3, k4 = jax.random.split(key, 4)
        self.w_ih = jax.random.uniform(k1, (4 * out_size, in_size), jnp.float32, -bound, bound)
        self.w_hh = jax.random.uniform(k2, (4 * out_size, out_size), jnp.float32, -bound, bound)
        self.b_ih = jax.random.uniform(k3, (4 * out_size,), jnp.float32, -bound, bound)
        self.b_hh = jax.random.uniform(k4, (4 * out_size,), jnp.float32, -bound, bound)

        # ---- Pack parameters ONCE into gate-major, lane-padded layout. -----------------
        H, In = out_size, in_size
        self._H_pad = _round_up(H, _LANE)
        self._In_pad = _round_up(In, _LANE)
        hp, inp = self._H_pad, self._In_pad

        # TN: gate-column tile.  Multiple of 128 that divides H_pad, <= 512 (so the v7x
        # megacore gets >1 N block when H is large) and keeps the double-buffered weight
        # blocks (4, In_pad+H_pad, TN) under ~6 MiB.
        bpe = jnp.dtype(param_dtype).itemsize
        m = hp // _LANE
        budget_chunks = max(1, (6 * 1024 * 1024) // (2 * 4 * (inp + hp) * _LANE * bpe))
        cap = max(1, min(m, 4, budget_chunks))
        d = max(dd for dd in range(1, cap + 1) if m % dd == 0)
        self._TN = _LANE * d

        b_sum = self.b_ih + self.b_hh
        wx = jnp.zeros((4, inp, hp), param_dtype)
        wh = jnp.zeros((4, hp, hp), param_dtype)
        bb = jnp.zeros((4, 1, hp), jnp.float32)
        for g in range(4):                           # gate order: i, f, g, o
            wx = wx.at[g, :In, :H].set(self.w_ih[g * H:(g + 1) * H, :].T.astype(param_dtype))
            wh = wh.at[g, :H, :H].set(self.w_hh[g * H:(g + 1) * H, :].T.astype(param_dtype))
            bb = bb.at[g, 0, :H].set(b_sum[g * H:(g + 1) * H])
        self.wx, self.wh, self.bb = wx, wh, bb

        self.h, self.c = None, None                  # padded f32 state [B_pad, H_pad]
        self._B_pad = self._TM = None
        self._step_vmem = self._seq_vmem = None

    def reset_state(self):
        self.h, self.c = None, None
        self._B_pad = self._TM = None
        self._step_vmem = self._seq_vmem = None

    def _ensure_state(self, batch):
        if self.h is not None:
            return
        bp = _round_up(max(batch, 1), _SUBLANE)
        if bp > 128:
            bp = _round_up(bp, 128)
        self._B_pad = bp
        self._TM = min(128, bp)
        self.h = jnp.zeros((bp, self._H_pad), jnp.float32)
        self.c = jnp.zeros((bp, self._H_pad), jnp.float32)

        # Generation-aware VMEM budgeting (only overrides the default when needed).
        bpe = jnp.dtype(self.param_dtype).itemsize
        tm, tn, hp, inp = self._TM, self._TN, self._H_pad, self._In_pad
        step_blk = (tm * inp * bpe + tm * hp * 4 + 3 * tm * tn * 4
                    + 4 * (inp + hp) * tn * bpe + 4 * tn * 4)
        self._step_vmem = _vmem_limit_for(2 * step_blk + 4 * tm * tn * 4)
        seq_est = (2 * bp * inp * bpe + 2 * bp * hp * 4
                   + 4 * (inp + hp) * hp * bpe + 4 * hp * 4 + 10 * bp * hp * 4)
        self._seq_vmem = _vmem_limit_for(seq_est)

    def __call__(self, x):
        """One stateful LSTMCell step (matches the PyTorch forward)."""
        B = x.shape[0]
        self._ensure_state(B)
        h_new, c_new, h_user = _lstm_step_pallas(
            x, self.h, self.c, self.wx, self.wh, self.bb,
            b_real=B, h_real=self.out_size, in_real=self.in_size,
            b_pad=self._B_pad, in_pad=self._In_pad,
            tm=self._TM, tn=self._TN, vmem_limit=self._step_vmem)
        self.h, self.c = h_new, c_new                # reassign immediately (c was donated)
        return h_user

    def forward_sequence(self, xs):
        """Fused time loop: xs [T, B, in_size] -> h sequence [T, B, out_size]."""
        T, B = xs.shape[0], xs.shape[1]
        self._ensure_state(B)
        h_seq, h_fin, c_fin = _lstm_seq_pallas(
            xs, self.h, self.c, self.wx, self.wh, self.bb,
            b_real=B, h_real=self.out_size, in_real=self.in_size,
            b_pad=self._B_pad, in_pad=self._In_pad, vmem_limit=self._seq_vmem)
        self.h, self.c = h_fin, c_fin
        return h_seq


# --------------------------------------------------------------------------------------
# Pure-JAX reference (PyTorch LSTMCell math)
# --------------------------------------------------------------------------------------
def _reference_step(x, h, c, w_ih, w_hh, b_ih, b_hh):
    H = h.shape[-1]
    gates = x @ w_ih.T + b_ih + h @ w_hh.T + b_hh
    i = jax.nn.sigmoid(gates[:, 0 * H:1 * H])
    f = jax.nn.sigmoid(gates[:, 1 * H:2 * H])
    g = jnp.tanh(gates[:, 2 * H:3 * H])
    o = jax.nn.sigmoid(gates[:, 3 * H:4 * H])
    c_new = f * c + i * g
    h_new = o * jnp.tanh(c_new)
    return h_new, c_new


if __name__ == "__main__":
    key = jax.random.PRNGKey(0)
    k_x1, k_x2, k_seq, k_params = jax.random.split(key, 4)

    batch, in_size, hidden, seq_len = 2, 16, 32, 8
    x1 = jax.random.normal(k_x1, (batch, in_size), jnp.float32)
    x2 = jax.random.normal(k_x2, (batch, in_size), jnp.float32)
    xs = jax.random.normal(k_seq, (seq_len, batch, in_size), jnp.float32)

    # Default (bf16 weights/activations, f32 state): perf path.
    model = StatefulLSTM(in_size, hidden, k_params)
    h1 = model(x1)
    h2 = jax.block_until_ready(model(x2))

    # f32 model: exact-numerics check + fused-sequence path.  Same key -> same weights.
    model32 = StatefulLSTM(in_size, hidden, k_params, param_dtype=jnp.float32)
    h1_32 = model32(x1)
    h2_32 = jax.block_until_ready(model32(x2))

    model32.reset_state()
    hs = jax.block_until_ready(model32.forward_sequence(xs))

    # References.
    zeros = jnp.zeros((batch, hidden), jnp.float32)
    h1_ref, c1_ref = _reference_step(x1, zeros, zeros,
                                     model32.w_ih, model32.w_hh, model32.b_ih, model32.b_hh)
    h2_ref, _ = _reference_step(x2, h1_ref, c1_ref,
                                model32.w_ih, model32.w_hh, model32.b_ih, model32.b_hh)
    h_r, c_r, hs_ref = zeros, zeros, []
    for t in range(seq_len):
        h_r, c_r = _reference_step(xs[t], h_r, c_r,
                                   model32.w_ih, model32.w_hh, model32.b_ih, model32.b_hh)
        hs_ref.append(h_r)
    hs_ref = jnp.stack(hs_ref)

    assert h1.shape == (batch, hidden) and h2.shape == (batch, hidden)
    assert hs.shape == (seq_len, batch, hidden)
    assert jnp.allclose(h1_32, h1_ref, atol=2e-5, rtol=2e-5)
    assert jnp.allclose(h2_32, h2_ref, atol=2e-5, rtol=2e-5)
    assert jnp.allclose(hs, hs_ref, atol=2e-5, rtol=2e-5)
    assert jnp.allclose(h1, h1_ref, atol=5e-2, rtol=5e-2)   # bf16-weight path
    assert jnp.allclose(h2, h2_ref, atol=5e-2, rtol=5e-2)

    print("KERNEL_OK")
</pallas_src>

<mosaic_0001>
module attributes {stable_mosaic.version = 11 : i64} {
  func.func @lstm_step_kernel(%arg0: i32, %arg1: i32, %arg2: memref<8x128xbf16, #tpu.memory_space<vmem>>, %arg3: memref<8x128xf32, #tpu.memory_space<vmem>>, %arg4: memref<8x128xf32, #tpu.memory_space<vmem>>, %arg5: memref<4x128x128xbf16, #tpu.memory_space<vmem>>, %arg6: memref<4x128x128xbf16, #tpu.memory_space<vmem>>, %arg7: memref<4x1x128xf32, #tpu.memory_space<vmem>>, %arg8: memref<8x128xf32, #tpu.memory_space<vmem>>, %arg9: memref<8x128xf32, #tpu.memory_space<vmem>>) attributes {dimension_semantics = [#tpu.dimension_semantics<parallel>, #tpu.dimension_semantics<parallel>], iteration_bounds = array<i64: 1, 1>, scalar_prefetch = 0 : i64, scratch_operands = 0 : i64, tpu.core_type = #tpu.core_type<tc>, window_params = [{transform_indices = @transform_0, window_bounds = array<i64: 8, 128>}, {transform_indices = @transform_1, window_bounds = array<i64: 8, 128>}, {transform_indices = @transform_2, window_bounds = array<i64: 8, 128>}, {transform_indices = @transform_3, window_bounds = array<i64: 4, 128, 128>}, {transform_indices = @transform_4, window_bounds = array<i64: 4, 128, 128>}, {transform_indices = @transform_5, window_bounds = array<i64: 4, 1, 128>}, {transform_indices = @transform_6, window_bounds = array<i64: 8, 128>}, {transform_indices = @transform_7, window_bounds = array<i64: 8, 128>}]} {
    %c0 = arith.constant 0 : index
    %c0_0 = arith.constant 0 : index
    %0 = vector.load %arg2[%c0, %c0_0] : memref<8x128xbf16, #tpu.memory_space<vmem>>, vector<8x128xbf16>
    %c0_1 = arith.constant 0 : index
    %c0_2 = arith.constant 0 : index
    %1 = vector.load %arg3[%c0_1, %c0_2] : memref<8x128xf32, #tpu.memory_space<vmem>>, vector<8x128xf32>
    %2 = arith.truncf %1 : vector<8x128xf32> to vector<8x128xbf16>
    %c0_3 = arith.constant 0 : index
    %c0_4 = arith.constant 0 : index
    %c0_5 = arith.constant 0 : index
    %3 = vector.load %arg5[%c0_3, %c0_4, %c0_5] : memref<4x128x128xbf16, #tpu.memory_space<vmem>>, vector<1x128x128xbf16>
    %4 = vector.shape_cast %3 : vector<1x128x128xbf16> to vector<128x128xbf16>
    %cst = arith.constant dense<0.000000e+00> : vector<8x128xf32>
    %5 = tpu.matmul %0, %4, %cst {dimension_numbers = #tpu.dot_dimension_numbers<[1], [0], [0], [1], [0, 0, 1, 1], [], []>} : vector<8x128xbf16>, vector<128x128xbf16>, vector<8x128xf32> -> vector<8x128xf32>
    %c0_6 = arith.constant 0 : index
    %c0_7 = arith.constant 0 : index
    %c0_8 = arith.constant 0 : index
    %6 = vector.load %arg6[%c0_6, %c0_7, %c0_8] : memref<4x128x128xbf16, #tpu.memory_space<vmem>>, vector<1x128x128xbf16>
    %7 = vector.shape_cast %6 : vector<1x128x128xbf16> to vector<128x128xbf16>
    %cst_9 = arith.constant dense<0.000000e+00> : vector<8x128xf32>
    %8 = tpu.matmul %2, %7, %cst_9 {dimension_numbers = #tpu.dot_dimension_numbers<[1], [0], [0], [1], [0, 0, 1, 1], [], []>} : vector<8x128xbf16>, vector<128x128xbf16>, vector<8x128xf32> -> vector<8x128xf32>
    %9 = arith.addf %5, %8 : vector<8x128xf32>
    %c0_10 = arith.constant 0 : index
    %c0_11 = arith.constant 0 : index
    %c0_12 = arith.constant 0 : index
    %10 = vector.load %arg7[%c0_10, %c0_11, %c0_12] : memref<4x1x128xf32, #tpu.memory_space<vmem>>, vector<1x1x128xf32>
    %11 = vector.shape_cast %10 : vector<1x1x128xf32> to vector<1x128xf32>
    %12 = vector.broadcast %11 : vector<1x128xf32> to vector<8x128xf32>
    %13 = arith.addf %9, %12 : vector<8x128xf32>
    %14 = arith.negf %13 : vector<8x128xf32>
    %15 = math.exp %14 : vector<8x128xf32>
    %cst_13 = arith.constant 1.000000e+00 : f32
    %16 = vector.broadcast %cst_13 : f32 to vector<8x128xf32>
    %17 = arith.addf %16, %15 : vector<8x128xf32>
    %18 = arith.divf %16, %17 : vector<8x128xf32>
    %c1 = arith.constant 1 : index
    %c0_14 = arith.constant 0 : index
    %c0_15 = arith.constant 0 : index
    %19 = vector.load %arg5[%c1, %c0_14, %c0_15] : memref<4x128x128xbf16, #tpu.memory_space<vmem>>, vector<1x128x128xbf16>
    %20 = vector.shape_cast %19 : vector<1x128x128xbf16> to vector<128x128xbf16>
    %cst_16 = arith.constant dense<0.000000e+00> : vector<8x128xf32>
    %21 = tpu.matmul %0, %20, %cst_16 {dimension_numbers = #tpu.dot_dimension_numbers<[1], [0], [0], [1], [0, 0, 1, 1], [], []>} : vector<8x128xbf16>, vector<128x128xbf16>, vector<8x128xf32> -> vector<8x128xf32>
    %c1_17 = arith.constant 1 : index
    %c0_18 = arith.constant 0 : index
    %c0_19 = arith.constant 0 : index
    %22 = vector.load %arg6[%c1_17, %c0_18, %c0_19] : memref<4x128x128xbf16, #tpu.memory_space<vmem>>, vector<1x128x128xbf16>
    %23 = vector.shape_cast %22 : vector<1x128x128xbf16> to vector<128x128xbf16>
    %cst_20 = arith.constant dense<0.000000e+00> : vector<8x128xf32>
    %24 = tpu.matmul %2, %23, %cst_20 {dimension_numbers = #tpu.dot_dimension_numbers<[1], [0], [0], [1], [0, 0, 1, 1], [], []>} : vector<8x128xbf16>, vector<128x128xbf16>, vector<8x128xf32> -> vector<8x128xf32>
    %25 = arith.addf %21, %24 : vector<8x128xf32>
    %c1_21 = arith.constant 1 : index
    %c0_22 = arith.constant 0 : index
    %c0_23 = arith.constant 0 : index
    %26 = vector.load %arg7[%c1_21, %c0_22, %c0_23] : memref<4x1x128xf32, #tpu.memory_space<vmem>>, vector<1x1x128xf32>
    %27 = vector.shape_cast %26 : vector<1x1x128xf32> to vector<1x128xf32>
    %28 = vector.broadcast %27 : vector<1x128xf32> to vector<8x128xf32>
    %29 = arith.addf %25, %28 : vector<8x128xf32>
    %30 = arith.negf %29 : vector<8x128xf32>
    %31 = math.exp %30 : vector<8x128xf32>
    %cst_24 = arith.constant 1.000000e+00 : f32
    %32 = vector.broadcast %cst_24 : f32 to vector<8x128xf32>
    %33 = arith.addf %32, %31 : vector<8x128xf32>
    %34 = arith.divf %32, %33 : vector<8x128xf32>
    %c2 = arith.constant 2 : index
    %c0_25 = arith.constant 0 : index
    %c0_26 = arith.constant 0 : index
    %35 = vector.load %arg5[%c2, %c0_25, %c0_26] : memref<4x128x128xbf16, #tpu.memory_space<vmem>>, vector<1x128x128xbf16>
    %36 = vector.shape_cast %35 : vector<1x128x128xbf16> to vector<128x128xbf16>
    %cst_27 = arith.constant dense<0.000000e+00> : vector<8x128xf32>
    %37 = tpu.matmul %0, %36, %cst_27 {dimension_numbers = #tpu.dot_dimension_numbers<[1], [0], [0], [1], [0, 0, 1, 1], [], []>} : vector<8x128xbf16>, vector<128x128xbf16>, vector<8x128xf32> -> vector<8x128xf32>
    %c2_28 = arith.constant 2 : index
    %c0_29 = arith.constant 0 : index
    %c0_30 = arith.constant 0 : index
    %38 = vector.load %arg6[%c2_28, %c0_29, %c0_30] : memref<4x128x128xbf16, #tpu.memory_space<vmem>>, vector<1x128x128xbf16>
    %39 = vector.shape_cast %38 : vector<1x128x128xbf16> to vector<128x128xbf16>
    %cst_31 = arith.constant dense<0.000000e+00> : vector<8x128xf32>
    %40 = tpu.matmul %2, %39, %cst_31 {dimension_numbers = #tpu.dot_dimension_numbers<[1], [0], [0], [1], [0, 0, 1, 1], [], []>} : vector<8x128xbf16>, vector<128x128xbf16>, vector<8x128xf32> -> vector<8x128xf32>
    %41 = arith.addf %37, %40 : vector<8x128xf32>
    %c2_32 = arith.constant 2 : index
    %c0_33 = arith.constant 0 : index
    %c0_34 = arith.constant 0 : index
    %42 = vector.load %arg7[%c2_32, %c0_33, %c0_34] : memref<4x1x128xf32, #tpu.memory_space<vmem>>, vector<1x1x128xf32>
    %43 = vector.shape_cast %42 : vector<1x1x128xf32> to vector<1x128xf32>
    %44 = vector.broadcast %43 : vector<1x128xf32> to vector<8x128xf32>
    %45 = arith.addf %41, %44 : vector<8x128xf32>
    %46 = math.tanh %45 : vector<8x128xf32>
    %c3 = arith.constant 3 : index
    %c0_35 = arith.constant 0 : index
    %c0_36 = arith.constant 0 : index
    %47 = vector.load %arg5[%c3, %c0_35, %c0_36] : memref<4x128x128xbf16, #tpu.memory_space<vmem>>, vector<1x128x128xbf16>
    %48 = vector.shape_cast %47 : vector<1x128x128xbf16> to vector<128x128xbf16>
    %cst_37 = arith.constant dense<0.000000e+00> : vector<8x128xf32>
    %49 = tpu.matmul %0, %48, %cst_37 {dimension_numbers = #tpu.dot_dimension_numbers<[1], [0], [0], [1], [0, 0, 1, 1], [], []>} : vector<8x128xbf16>, vector<128x128xbf16>, vector<8x128xf32> -> vector<8x128xf32>
    %c3_38 = arith.constant 3 : index
    %c0_39 = arith.constant 0 : index
    %c0_40 = arith.constant 0 : index
    %50 = vector.load %arg6[%c3_38, %c0_39, %c0_40] : memref<4x128x128xbf16, #tpu.memory_space<vmem>>, vector<1x128x128xbf16>
    %51 = vector.shape_cast %50 : vector<1x128x128xbf16> to vector<128x128xbf16>
    %cst_41 = arith.constant dense<0.000000e+00> : vector<8x128xf32>
    %52 = tpu.matmul %2, %51, %cst_41 {dimension_numbers = #tpu.dot_dimension_numbers<[1], [0], [0], [1], [0, 0, 1, 1], [], []>} : vector<8x128xbf16>, vector<128x128xbf16>, vector<8x128xf32> -> vector<8x128xf32>
    %53 = arith.addf %49, %52 : vector<8x128xf32>
    %c3_42 = arith.constant 3 : index
    %c0_43 = arith.constant 0 : index
    %c0_44 = arith.constant 0 : index
    %54 = vector.load %arg7[%c3_42, %c0_43, %c0_44] : memref<4x1x128xf32, #tpu.memory_space<vmem>>, vector<1x1x128xf32>
    %55 = vector.shape_cast %54 : vector<1x1x128xf32> to vector<1x128xf32>
    %56 = vector.broadcast %55 : vector<1x128xf32> to vector<8x128xf32>
    %57 = arith.addf %53, %56 : vector<8x128xf32>
    %58 = arith.negf %57 : vector<8x128xf32>
    %59 = math.exp %58 : vector<8x128xf32>
    %cst_45 = arith.constant 1.000000e+00 : f32
    %60 = vector.broadcast %cst_45 : f32 to vector<8x128xf32>
    %61 = arith.addf %60, %59 : vector<8x128xf32>
    %62 = arith.divf %60, %61 : vector<8x128xf32>
    %c0_46 = arith.constant 0 : index
    %c0_47 = arith.constant 0 : index
    %63 = vector.load %arg4[%c0_46, %c0_47] : memref<8x128xf32, #tpu.memory_space<vmem>>, vector<8x128xf32>
    %64 = arith.mulf %34, %63 : vector<8x128xf32>
    %65 = arith.mulf %18, %46 : vector<8x128xf32>
    %66 = arith.addf %64, %65 : vector<8x128xf32>
    %67 = math.tanh %66 : vector<8x128xf32>
    %68 = arith.mulf %62, %67 : vector<8x128xf32>
    %c0_48 = arith.constant 0 : index
    %c0_49 = arith.constant 0 : index
    %69 = vector.load %arg9[%c0_48, %c0_49] : memref<8x128xf32, #tpu.memory_space<vmem>>, vector<8x128xf32>
    tpu.vector_store %arg9[%c0_48, %c0_49], %66 {strides = array<i32>} : memref<8x128xf32, #tpu.memory_space<vmem>>, vector<8x128xf32>,
    %c0_50 = arith.constant 0 : index
    %c0_51 = arith.constant 0 : index
    %70 = vector.load %arg8[%c0_50, %c0_51] : memref<8x128xf32, #tpu.memory_space<vmem>>, vector<8x128xf32>
    tpu.vector_store %arg8[%c0_50, %c0_51], %68 {strides = array<i32>} : memref<8x128xf32, #tpu.memory_space<vmem>>, vector<8x128xf32>,
    return
  }
  func.func @transform_0(%arg0: i32, %arg1: i32) -> (i32, i32) {
    %c0_i32 = arith.constant 0 : i32
    %c0_i32_0 = arith.constant 0 : i32
    return %arg0, %c0_i32 : i32, i32
  }
  func.func @transform_1(%arg0: i32, %arg1: i32) -> (i32, i32) {
    %c0_i32 = arith.constant 0 : i32
    %c0_i32_0 = arith.constant 0 : i32
    return %arg0, %c0_i32 : i32, i32
  }
  func.func @transform_2(%arg0: i32, %arg1: i32) -> (i32, i32) {
    %c0_i32 = arith.constant 0 : i32
    return %arg0, %arg1 : i32, i32
  }
  func.func @transform_3(%arg0: i32, %arg1: i32) -> (i32, i32, i32) {
    %c0_i32 = arith.constant 0 : i32
    %c0_i32_0 = arith.constant 0 : i32
    %c0_i32_1 = arith.constant 0 : i32
    return %c0_i32, %c0_i32_0, %arg1 : i32, i32, i32
  }
  func.func @transform_4(%arg0: i32, %arg1: i32) -> (i32, i32, i32) {
    %c0_i32 = arith.constant 0 : i32
    %c0_i32_0 = arith.constant 0 : i32
    %c0_i32_1 = arith.constant 0 : i32
    return %c0_i32, %c0_i32_0, %arg1 : i32, i32, i32
  }
  func.func @transform_5(%arg0: i32, %arg1: i32) -> (i32, i32, i32) {
    %c0_i32 = arith.constant 0 : i32
    %c0_i32_0 = arith.constant 0 : i32
    %c0_i32_1 = arith.constant 0 : i32
    return %c0_i32, %c0_i32_0, %arg1 : i32, i32, i32
  }
  func.func @transform_6(%arg0: i32, %arg1: i32) -> (i32, i32) {
    %c0_i32 = arith.constant 0 : i32
    return %arg0, %arg1 : i32, i32
  }
  func.func @transform_7(%arg0: i32, %arg1: i32) -> (i32, i32) {
    %c0_i32 = arith.constant 0 : i32
    return %arg0, %arg1 : i32, i32
  }
}

</mosaic_0001>

<llo_original>
// kernel: _lstm_step_pallas.1
$region0: #{_lstm_step_pallas.1}
  #allocation0 [shape = 'u32[]', space=smem, size = 0x4, offset = 0x4, fixed_abs, tag = 'smem constant byte address 0x4 - core index']
  #allocation1 [shape = 'u32[72,128]{1,0:T(1,128)}', space=vmem, size = 0x9000, scoped, tag = 'internal scratch']
  %s0 = inlined_call_operand.vmem [shape: bf16[8,128], index: 0, kind: input, shape index: {}]
  %s1 = inlined_call_operand.vmem [shape: f32[8,128], index: 1, kind: input, shape index: {}]
  %s2 = inlined_call_operand.vmem [shape: f32[8,128], index: 2, kind: input, shape index: {}, may-alias: {2,7}]
  %s3 = inlined_call_operand.hbm [shape: bf16[4,128,128], index: 3, kind: input, shape index: {}]
  %s4 = inlined_call_operand.hbm [shape: bf16[4,128,128], index: 4, kind: input, shape index: {}]
  %s5 = inlined_call_operand.vmem [shape: f32[4,1,128], index: 5, kind: input, shape index: {}]
  %s6 = inlined_call_operand.vmem [shape: f32[8,128], index: 6, kind: output, shape index: {0}]
  %s7 = inlined_call_operand.vmem [shape: f32[8,128], index: 7, kind: output, shape index: {1}, may-alias: {2,7}]
  %8 = xla_tuple %s6, %s7
  %s9 = sld [smem:[#allocation0]]
  $region50: #{_lstm_step_pallas.1} parent=0
    _
  %s11 = ssub.s32 1, %s9
  %s12 = scalar_select 0, %s11, %s9
  $region1: #{_lstm_step_pallas.1} parent=0
    #allocation2 [shape = 'u8[131072]{0}', space=vmem, size = 0x20000, scoped, tag = 'input window, operand 3, single buffered']
    #allocation3 [shape = 's32[1]{0}', space=sflag, size = 0x4, scoped, tag = 'scoped memory for _lstm_step_pallas.1']
    #allocation4 [shape = 'u8[131072]{0}', space=vmem, size = 0x20000, scoped, tag = 'input window, operand 4, single buffered']
    #allocation5 [shape = 's32[1]{0}', space=sflag, size = 0x4, scoped, tag = 'scoped memory for _lstm_step_pallas.1']
    %13 = vsyncpa [#allocation3], 0
    %14 = vsyncpa [#allocation5], 0
    // Predicated region
    $region2: #{_lstm_step_pallas.1} parent=1 // pred_check
      _
    $region3: #{_lstm_step_pallas.1} parent=1 // pred_check_branch
      %16 = sbr.rel (0) target = $region5
    $region4: #{_lstm_step_pallas.1} parent=1 // pred_region
      _
    $region5: #{_lstm_step_pallas.1} parent=1 // pred_fallthru
      _
    // Predicated region
    $region6: #{_lstm_step_pallas.1} parent=1 // pred_check
      _
    $region7: #{_lstm_step_pallas.1} parent=1 // pred_check_branch
      %18 = sbr.rel (0) target = $region9
    $region8: #{_lstm_step_pallas.1} parent=1 // pred_region
      _
    $region9: #{_lstm_step_pallas.1} parent=1 // pred_fallthru
      _
    // Predicated region
    $region10: #{_lstm_step_pallas.1} parent=1 // pred_check
      _
    $region11: #{_lstm_step_pallas.1} parent=1 // pred_check_branch
      %20 = sbr.rel (0) target = $region13
    $region12: #{_lstm_step_pallas.1} parent=1 // pred_region
      _
    $region13: #{_lstm_step_pallas.1} parent=1 // pred_fallthru
      _
    // Predicated region
    $region14: #{_lstm_step_pallas.1} parent=1 // pred_check
      _
    $region15: #{_lstm_step_pallas.1} parent=1 // pred_check_branch
      %22 = sbr.rel (0) target = $region17
    $region16: #{_lstm_step_pallas.1} parent=1 // pred_region
      %24 = vsyncadd [#allocation3], 0
      %s25 = sshll.u32 %s3, 4
      %s26 = int_to_ptr.hbm [resolvable:$true] %s25
      %s27 = sshll.u32 [#allocation2], 4
      %s28 = int_to_ptr.vmem [resolvable:$true] %s27
      %33 = dma.hbm_to_vmem [thread:$0]  %s26, 4096, %s28, [#allocation3], 64, 64, 4
    $region17: #{_lstm_step_pallas.1} parent=1 // pred_fallthru
      _
    // Predicated region
    $region18: #{_lstm_step_pallas.1} parent=1 // pred_check
      _
    $region19: #{_lstm_step_pallas.1} parent=1 // pred_check_branch
      %35 = sbr.rel (0) target = $region21
    $region20: #{_lstm_step_pallas.1} parent=1 // pred_region
      %37 = vsyncadd [#allocation5], 0
      %s38 = sshll.u32 %s4, 4
      %s39 = int_to_ptr.hbm [resolvable:$true] %s38
      %s40 = sshll.u32 [#allocation4], 4
      %s41 = int_to_ptr.vmem [resolvable:$true] %s40
      %46 = dma.hbm_to_vmem [thread:$0]  %s39, 4096, %s41, [#allocation5], 64, 64, 4
    $region21: #{_lstm_step_pallas.1} parent=1 // pred_fallthru
      _
    // Predicated region
    $region22: #{_lstm_step_pallas.1} parent=1 // pred_check
      _
    $region23: #{_lstm_step_pallas.1} parent=1 // pred_check_branch
      %48 = sbr.rel (0) target = $region25
    $region24: #{_lstm_step_pallas.1} parent=1 // pred_region
      _
    $region25: #{_lstm_step_pallas.1} parent=1 // pred_fallthru
      _
    // Predicated region
    $region26: #{_lstm_step_pallas.1} parent=1 // pred_check
      _
    $region27: #{_lstm_step_pallas.1} parent=1 // pred_check_branch
      %50 = sbr.rel (0) target = $region29
    $region28: #{_lstm_step_pallas.1} parent=1 // pred_region
      %52 = dma.done [#allocation3], 4096
    $region29: #{_lstm_step_pallas.1} parent=1 // pred_fallthru
      _
    // Predicated region
    $region30: #{_lstm_step_pallas.1} parent=1 // pred_check
      _
    $region31: #{_lstm_step_pallas.1} parent=1 // pred_check_branch
      %54 = sbr.rel (0) target = $region33
    $region32: #{_lstm_step_pallas.1} parent=1 // pred_region
      %56 = dma.done [#allocation5], 4096
    $region33: #{_lstm_step_pallas.1} parent=1 // pred_fallthru
      _
    %v57 = vld [vmem:[%s0] sm:$0xf]
    %v58 = vld [vmem:[%s1] sm:$0xff]
    %v59 = vpack.c.bf16 %v58, %v58
    %v60 = vld [vmem:[#allocation2] sm:$0xf]
    %v61 = vld [vmem:[#allocation2 + $0x4] sm:$0xf]
    %v62 = vld [vmem:[#allocation2 + $0x8] sm:$0xf]
    %v63 = vld [vmem:[#allocation2 + $0xc] sm:$0xf]
    %v64 = vld [vmem:[#allocation2 + $0x10] sm:$0xf]
    %v65 = vld [vmem:[#allocation2 + $0x14] sm:$0xf]
    %v66 = vld [vmem:[#allocation2 + $0x18] sm:$0xf]
    %v67 = vld [vmem:[#allocation2 + $0x1c] sm:$0xf]
    %v68 = vld [vmem:[#allocation2 + $0x20] sm:$0xf]
    %v69 = vld [vmem:[#allocation2 + $0x24] sm:$0xf]
    %v70 = vld [vmem:[#allocation2 + $0x28] sm:$0xf]
    %v71 = vld [vmem:[#allocation2 + $0x2c] sm:$0xf]
    %v72 = vld [vmem:[#allocation2 + $0x30] sm:$0xf]
    %v73 = vld [vmem:[#allocation2 + $0x34] sm:$0xf]
    %v74 = vld [vmem:[#allocation2 + $0x38] sm:$0xf]
    %v75 = vld [vmem:[#allocation2 + $0x3c] sm:$0xf]
    %v76 = vld [vmem:[#allocation4] sm:$0xf]
    %v77 = vld [vmem:[#allocation4 + $0x4] sm:$0xf]
    %v78 = vld [vmem:[#allocation4 + $0x8] sm:$0xf]
    %v79 = vld [vmem:[#allocation4 + $0xc] sm:$0xf]
    %v80 = vld [vmem:[#allocation4 + $0x10] sm:$0xf]
    %v81 = vld [vmem:[#allocation4 + $0x14] sm:$0xf]
    %v82 = vld [vmem:[#allocation4 + $0x18] sm:$0xf]
    %v83 = vld [vmem:[#allocation4 + $0x1c] sm:$0xf]
    %v84 = vld [vmem:[#allocation4 + $0x20] sm:$0xf]
    %v85 = vld [vmem:[#allocation4 + $0x24] sm:$0xf]
    %v86 = vld [vmem:[#allocation4 + $0x28] sm:$0xf]
    %v87 = vld [vmem:[#allocation4 + $0x2c] sm:$0xf]
    %v88 = vld [vmem:[#allocation4 + $0x30] sm:$0xf]
    %v89 = vld [vmem:[#allocation4 + $0x34] sm:$0xf]
    %v90 = vld [vmem:[#allocation4 + $0x38] sm:$0xf]
    %v91 = vld [vmem:[#allocation4 + $0x3c] sm:$0xf]
    %v108 = vunpack.c.l.b16 %v76
    %v109 = vunpack.c.l.b16 %v77
    %v110 = vunpack.c.l.b16 %v78
    %v111 = vunpack.c.l.b16 %v79
    %v112 = vunpack.c.l.b16 %v80
    %v113 = vunpack.c.l.b16 %v81
    %v114 = vunpack.c.l.b16 %v82
    %v115 = vunpack.c.l.b16 %v83
    %v116 = vunpack.c.l.b16 %v84
    %v117 = vunpack.c.l.b16 %v85
    %v118 = vunpack.c.l.b16 %v86
    %v119 = vunpack.c.l.b16 %v87
    %v120 = vunpack.c.l.b16 %v88
    %v121 = vunpack.c.l.b16 %v89
    %v122 = vunpack.c.l.b16 %v90
    %v123 = vunpack.c.l.b16 %v91
    %v124 = vpack.c.b16 %v109, %v108
    %v125 = vpack.c.b16 %v111, %v110
    %v126 = vpack.c.b16 %v113, %v112
    %v127 = vpack.c.b16 %v115, %v114
    %v128 = vpack.c.b16 %v117, %v116
    %v129 = vpack.c.b16 %v119, %v118
    %v130 = vpack.c.b16 %v121, %v120
    %v131 = vpack.c.b16 %v123, %v122
    %140 = vmatpush.bf16.msra.mxu0 %v131
    %141 = vmatpush.bf16.msra.mxu0 %v130
    %142 = vmatpush.bf16.msra.mxu0 %v129
    %143 = vmatpush.bf16.msra.mxu0 %v128
    %144 = vmatpush.bf16.msra.mxu0 %v127
    %145 = vmatpush.bf16.msra.mxu0 %v126
    %146 = vmatpush.bf16.msra.mxu0 %v125
    %147 = vmatpush.bf16.msra.mxu0 %v124
    %148 = vmatmul.bf16.gmra.mxu0 %v59
    %v149 = vpop.f32.mrf.mxu0
    %v150 = vadd.f32 0.0, %v149
    %v151 = vpop.f32.mrf.mxu0
    %152 = vdwg.mxu0
    %v169 = vunpack.c.l.b16 %v60
    %v170 = vunpack.c.l.b16 %v61
    %v171 = vunpack.c.l.b16 %v62
    %v172 = vunpack.c.l.b16 %v63
    %v173 = vunpack.c.l.b16 %v64
    %v174 = vunpack.c.l.b16 %v65
    %v175 = vunpack.c.l.b16 %v66
    %v176 = vunpack.c.l.b16 %v67
    %v177 = vunpack.c.l.b16 %v68
    %v178 = vunpack.c.l.b16 %v69
    %v179 = vunpack.c.l.b16 %v70
    %v180 = vunpack.c.l.b16 %v71
    %v181 = vunpack.c.l.b16 %v72
    %v182 = vunpack.c.l.b16 %v73
    %v183 = vunpack.c.l.b16 %v74
    %v184 = vunpack.c.l.b16 %v75
    %v185 = vpack.c.b16 %v170, %v169
    %v186 = vpack.c.b16 %v172, %v171
    %v187 = vpack.c.b16 %v174, %v173
    %v188 = vpack.c.b16 %v176, %v175
    %v189 = vpack.c.b16 %v178, %v177
    %v190 = vpack.c.b16 %v180, %v179
    %v191 = vpack.c.b16 %v182, %v181
    %v192 = vpack.c.b16 %v184, %v183
    %201 = vmatpush.bf16.msra.mxu0 %v192
    %202 = vmatpush.bf16.msra.mxu0 %v191
    %203 = vmatpush.bf16.msra.mxu0 %v190
    %204 = vmatpush.bf16.msra.mxu0 %v189
    %205 = vmatpush.bf16.msra.mxu0 %v188
    %206 = vmatpush.bf16.msra.mxu0 %v187
    %207 = vmatpush.bf16.msra.mxu0 %v186
    %208 = vmatpush.bf16.msra.mxu0 %v185
    %209 = vmatmul.bf16.gmra.mxu0 %v57
    %v210 = vpop.f32.mrf.mxu0
    %v211 = vadd.f32 %v150, %v210
    %v212 = vpop.f32.mrf.mxu0
    %213 = vdwg.mxu0
    %v214 = vld [vmem:[%s5] sm:$0x1]
    %v216 = vperm.slane %v214, 0
    %v218 = vadd.f32 %v211, %v216
    %v219 = vxor.u32 %v218, 2147483648
    %v220 = vmul.f32 %v219, 1.442695
    %v221 = vpow.pop %v220
    %v222 = vadd.f32 %v221, 1.0
    %v223 = vrcp.pop %v222
    %v224 = vmul.f32 %v222, %v223
    %v225 = vsub.f32 1.0, %v224
    %v226 = vmul.f32 %v223, %v225
    %v227 = vadd.f32 %v223, %v226
    %vm228 = vweird.f32 %v222
    %vm229 = vweird.f32 %v223
    %vm230 = vmor %vm228, %vm229
    %v231 = vsel %vm230, %v223, %v227
    %v232 = vand.u32 2147483647, %v222
    %vm233 = vcmp.eq.f32.partialorder %v232, 8.507059e+37
    %v234 = vand.u32 %v222, 2147483648
    %v235 = vor.u32 1.1754944e-38, %v234
    %v236 = vsel %vm233, %v235, %v231
    %v237 = vmul.f32 1.0, %v236
    %s238 = scalar_lea.vmem [#allocation2], 64
    %v239 = vld [vmem:[%s238] sm:$0xf]
    %v240 = vld [vmem:[%s238 + $0x4] sm:$0xf]
    %v241 = vld [vmem:[%s238 + $0x8] sm:$0xf]
    %v242 = vld [vmem:[%s238 + $0xc] sm:$0xf]
    %v243 = vld [vmem:[%s238 + $0x10] sm:$0xf]
    %v244 = vld [vmem:[%s238 + $0x14] sm:$0xf]
    %v245 = vld [vmem:[%s238 + $0x18] sm:$0xf]
    %v246 = vld [vmem:[%s238 + $0x1c] sm:$0xf]
    %v247 = vld [vmem:[%s238 + $0x20] sm:$0xf]
    %v248 = vld [vmem:[%s238 + $0x24] sm:$0xf]
    %v249 = vld [vmem:[%s238 + $0x28] sm:$0xf]
    %v250 = vld [vmem:[%s238 + $0x2c] sm:$0xf]
    %v251 = vld [vmem:[%s238 + $0x30] sm:$0xf]
    %v252 = vld [vmem:[%s238 + $0x34] sm:$0xf]
    %v253 = vld [vmem:[%s238 + $0x38] sm:$0xf]
    %v254 = vld [vmem:[%s238 + $0x3c] sm:$0xf]
    %s255 = scalar_lea.vmem [#allocation4], 64
    %v256 = vld [vmem:[%s255] sm:$0xf]
    %v257 = vld [vmem:[%s255 + $0x4] sm:$0xf]
    %v258 = vld [vmem:[%s255 + $0x8] sm:$0xf]
    %v259 = vld [vmem:[%s255 + $0xc] sm:$0xf]
    %v260 = vld [vmem:[%s255 + $0x10] sm:$0xf]
    %v261 = vld [vmem:[%s255 + $0x14] sm:$0xf]
    %v262 = vld [vmem:[%s255 + $0x18] sm:$0xf]
    %v263 = vld [vmem:[%s255 + $0x1c] sm:$0xf]
    %v264 = vld [vmem:[%s255 + $0x20] sm:$0xf]
    %v265 = vld [vmem:[%s255 + $0x24] sm:$0xf]
    %v266 = vld [vmem:[%s255 + $0x28] sm:$0xf]
    %v267 = vld [vmem:[%s255 + $0x2c] sm:$0xf]
    %v268 = vld [vmem:[%s255 + $0x30] sm:$0xf]
    %v269 = vld [vmem:[%s255 + $0x34] sm:$0xf]
    %v270 = vld [vmem:[%s255 + $0x38] sm:$0xf]
    %v271 = vld [vmem:[%s255 + $0x3c] sm:$0xf]
    %v288 = vunpack.c.l.b16 %v256
    %v289 = vunpack.c.l.b16 %v257
    %v290 = vunpack.c.l.b16 %v258
    %v291 = vunpack.c.l.b16 %v259
    %v292 = vunpack.c.l.b16 %v260
    %v293 = vunpack.c.l.b16 %v261
    %v294 = vunpack.c.l.b16 %v262
    %v295 = vunpack.c.l.b16 %v263
    %v296 = vunpack.c.l.b16 %v264
    %v297 = vunpack.c.l.b16 %v265
    %v298 = vunpack.c.l.b16 %v266
    %v299 = vunpack.c.l.b16 %v267
    %v300 = vunpack.c.l.b16 %v268
    %v301 = vunpack.c.l.b16 %v269
    %v302 = vunpack.c.l.b16 %v270
    %v303 = vunpack.c.l.b16 %v271
    %v304 = vpack.c.b16 %v289, %v288
    %v305 = vpack.c.b16 %v291, %v290
    %v306 = vpack.c.b16 %v293, %v292
    %v307 = vpack.c.b16 %v295, %v294
    %v308 = vpack.c.b16 %v297, %v296
    %v309 = vpack.c.b16 %v299, %v298
    %v310 = vpack.c.b16 %v301, %v300
    %v311 = vpack.c.b16 %v303, %v302
    %320 = vmatpush.bf16.msra.mxu0 %v311
    %321 = vmatpush.bf16.msra.mxu0 %v310
    %322 = vmatpush.bf16.msra.mxu0 %v309
    %323 = vmatpush.bf16.msra.mxu0 %v308
    %324 = vmatpush.bf16.msra.mxu0 %v307
    %325 = vmatpush.bf16.msra.mxu0 %v306
    %326 = vmatpush.bf16.msra.mxu0 %v305
    %327 = vmatpush.bf16.msra.mxu0 %v304
    %328 = vmatmul.bf16.gmra.mxu0 %v59
    %v329 = vpop.f32.mrf.mxu0
    %v330 = vadd.f32 0.0, %v329
    %v331 = vpop.f32.mrf.mxu0
    %332 = vdwg.mxu0
    %v349 = vunpack.c.l.b16 %v239
    %v350 = vunpack.c.l.b16 %v240
    %v351 = vunpack.c.l.b16 %v241
    %v352 = vunpack.c.l.b16 %v242
    %v353 = vunpack.c.l.b16 %v243
    %v354 = vunpack.c.l.b16 %v244
    %v355 = vunpack.c.l.b16 %v245
    %v356 = vunpack.c.l.b16 %v246
    %v357 = vunpack.c.l.b16 %v247
    %v358 = vunpack.c.l.b16 %v248
    %v359 = vunpack.c.l.b16 %v249
    %v360 = vunpack.c.l.b16 %v250
    %v361 = vunpack.c.l.b16 %v251
    %v362 = vunpack.c.l.b16 %v252
    %v363 = vunpack.c.l.b16 %v253
    %v364 = vunpack.c.l.b16 %v254
    %v365 = vpack.c.b16 %v350, %v349
    %v366 = vpack.c.b16 %v352, %v351
    %v367 = vpack.c.b16 %v354, %v353
    %v368 = vpack.c.b16 %v356, %v355
    %v369 = vpack.c.b16 %v358, %v357
    %v370 = vpack.c.b16 %v360, %v359
    %v371 = vpack.c.b16 %v362, %v361
    %v372 = vpack.c.b16 %v364, %v363
    %381 = vmatpush.bf16.msra.mxu0 %v372
    %382 = vmatpush.bf16.msra.mxu0 %v371
    %383 = vmatpush.bf16.msra.mxu0 %v370
    %384 = vmatpush.bf16.msra.mxu0 %v369
    %385 = vmatpush.bf16.msra.mxu0 %v368
    %386 = vmatpush.bf16.msra.mxu0 %v367
    %387 = vmatpush.bf16.msra.mxu0 %v366
    %388 = vmatpush.bf16.msra.mxu0 %v365
    %389 = vmatmul.bf16.gmra.mxu0 %v57
    %v390 = vpop.f32.mrf.mxu0
    %v391 = vadd.f32 %v330, %v390
    %v392 = vpop.f32.mrf.mxu0
    %393 = vdwg.mxu0
    %s394 = scalar_lea.vmem %s5, 1
    %v395 = vld [vmem:[%s394] sm:$0x1]
    %v397 = vperm.slane %v395, 0
    %v399 = vadd.f32 %v391, %v397
    %v400 = vxor.u32 %v399, 2147483648
    %v401 = vmul.f32 %v400, 1.442695
    %v402 = vpow.pop %v401
    %v403 = vadd.f32 %v402, 1.0
    %v404 = vrcp.pop %v403
    %v405 = vmul.f32 %v403, %v404
    %v406 = vsub.f32 1.0, %v405
    %v407 = vmul.f32 %v404, %v406
    %v408 = vadd.f32 %v404, %v407
    %vm409 = vweird.f32 %v403
    %vm410 = vweird.f32 %v404
    %vm411 = vmor %vm409, %vm410
    %v412 = vsel %vm411, %v404, %v408
    %v413 = vand.u32 2147483647, %v403
    %vm414 = vcmp.eq.f32.partialorder %v413, 8.507059e+37
    %v415 = vand.u32 %v403, 2147483648
    %v416 = vor.u32 1.1754944e-38, %v415
    %v417 = vsel %vm414, %v416, %v412
    %v418 = vmul.f32 1.0, %v417
    %s419 = scalar_lea.vmem [#allocation2], 128
    %v420 = vld [vmem:[%s419] sm:$0xf]
    %v421 = vld [vmem:[%s419 + $0x4] sm:$0xf]
    %v422 = vld [vmem:[%s419 + $0x8] sm:$0xf]
    %v423 = vld [vmem:[%s419 + $0xc] sm:$0xf]
    %v424 = vld [vmem:[%s419 + $0x10] sm:$0xf]
    %v425 = vld [vmem:[%s419 + $0x14] sm:$0xf]
    %v426 = vld [vmem:[%s419 + $0x18] sm:$0xf]
    %v427 = vld [vmem:[%s419 + $0x1c] sm:$0xf]
    %v428 = vld [vmem:[%s419 + $0x20] sm:$0xf]
    %v429 = vld [vmem:[%s419 + $0x24] sm:$0xf]
    %v430 = vld [vmem:[%s419 + $0x28] sm:$0xf]
    %v431 = vld [vmem:[%s419 + $0x2c] sm:$0xf]
    %v432 = vld [vmem:[%s419 + $0x30] sm:$0xf]
    %v433 = vld [vmem:[%s419 + $0x34] sm:$0xf]
    %v434 = vld [vmem:[%s419 + $0x38] sm:$0xf]
    %v435 = vld [vmem:[%s419 + $0x3c] sm:$0xf]
    %s436 = scalar_lea.vmem [#allocation4], 128
    %v437 = vld [vmem:[%s436] sm:$0xf]
    %v438 = vld [vmem:[%s436 + $0x4] sm:$0xf]
    %v439 = vld [vmem:[%s436 + $0x8] sm:$0xf]
    %v440 = vld [vmem:[%s436 + $0xc] sm:$0xf]
    %v441 = vld [vmem:[%s436 + $0x10] sm:$0xf]
    %v442 = vld [vmem:[%s436 + $0x14] sm:$0xf]
    %v443 = vld [vmem:[%s436 + $0x18] sm:$0xf]
    %v444 = vld [vmem:[%s436 + $0x1c] sm:$0xf]
    %v445 = vld [vmem:[%s436 + $0x20] sm:$0xf]
    %v446 = vld [vmem:[%s436 + $0x24] sm:$0xf]
    %v447 = vld [vmem:[%s436 + $0x28] sm:$0xf]
    %v448 = vld [vmem:[%s436 + $0x2c] sm:$0xf]
    %v449 = vld [vmem:[%s436 + $0x30] sm:$0xf]
    %v450 = vld [vmem:[%s436 + $0x34] sm:$0xf]
    %v451 = vld [vmem:[%s436 + $0x38] sm:$0xf]
    %v452 = vld [vmem:[%s436 + $0x3c] sm:$0xf]
    %v469 = vunpack.c.l.b16 %v437
    %v470 = vunpack.c.l.b16 %v438
    %v471 = vunpack.c.l.b16 %v439
    %v472 = vunpack.c.l.b16 %v440
    %v473 = vunpack.c.l.b16 %v441
    %v474 = vunpack.c.l.b16 %v442
    %v475 = vunpack.c.l.b16 %v443
    %v476 = vunpack.c.l.b16 %v444
    %v477 = vunpack.c.l.b16 %v445
    %v478 = vunpack.c.l.b16 %v446
    %v479 = vunpack.c.l.b16 %v447
    %v480 = vunpack.c.l.b16 %v448
    %v481 = vunpack.c.l.b16 %v449
    %v482 = vunpack.c.l.b16 %v450
    %v483 = vunpack.c.l.b16 %v451
    %v484 = vunpack.c.l.b16 %v452
    %v485 = vpack.c.b16 %v470, %v469
    %v486 = vpack.c.b16 %v472, %v471
    %v487 = vpack.c.b16 %v474, %v473
    %v488 = vpack.c.b16 %v476, %v475
    %v489 = vpack.c.b16 %v478, %v477
    %v490 = vpack.c.b16 %v480, %v479
    %v491 = vpack.c.b16 %v482, %v481
    %v492 = vpack.c.b16 %v484, %v483
    %501 = vmatpush.bf16.msra.mxu0 %v492
    %502 = vmatpush.bf16.msra.mxu0 %v491
    %503 = vmatpush.bf16.msra.mxu0 %v490
    %504 = vmatpush.bf16.msra.mxu0 %v489
    %505 = vmatpush.bf16.msra.mxu0 %v488
    %506 = vmatpush.bf16.msra.mxu0 %v487
    %507 = vmatpush.bf16.msra.mxu0 %v486
    %508 = vmatpush.bf16.msra.mxu0 %v485
    %509 = vmatmul.bf16.gmra.mxu0 %v59
    %v510 = vpop.f32.mrf.mxu0
    %v511 = vadd.f32 0.0, %v510
    %v512 = vpop.f32.mrf.mxu0
    %513 = vdwg.mxu0
    %v530 = vunpack.c.l.b16 %v420
    %v531 = vunpack.c.l.b16 %v421
    %v532 = vunpack.c.l.b16 %v422
    %v533 = vunpack.c.l.b16 %v423
    %v534 = vunpack.c.l.b16 %v424
    %v535 = vunpack.c.l.b16 %v425
    %v536 = vunpack.c.l.b16 %v426
    %v537 = vunpack.c.l.b16 %v427
    %v538 = vunpack.c.l.b16 %v428
    %v539 = vunpack.c.l.b16 %v429
    %v540 = vunpack.c.l.b16 %v430
    %v541 = vunpack.c.l.b16 %v431
    %v542 = vunpack.c.l.b16 %v432
    %v543 = vunpack.c.l.b16 %v433
    %v544 = vunpack.c.l.b16 %v434
    %v545 = vunpack.c.l.b16 %v435
    %v546 = vpack.c.b16 %v531, %v530
    %v547 = vpack.c.b16 %v533, %v532
    %v548 = vpack.c.b16 %v535, %v534
    %v549 = vpack.c.b16 %v537, %v536
    %v550 = vpack.c.b16 %v539, %v538
    %v551 = vpack.c.b16 %v541, %v540
    %v552 = vpack.c.b16 %v543, %v542
    %v553 = vpack.c.b16 %v545, %v544
    %562 = vmatpush.bf16.msra.mxu0 %v553
    %563 = vmatpush.bf16.msra.mxu0 %v552
    %564 = vmatpush.bf16.msra.mxu0 %v551
    %565 = vmatpush.bf16.msra.mxu0 %v550
    %566 = vmatpush.bf16.msra.mxu0 %v549
    %567 = vmatpush.bf16.msra.mxu0 %v548
    %568 = vmatpush.bf16.msra.mxu0 %v547
    %569 = vmatpush.bf16.msra.mxu0 %v546
    %570 = vmatmul.bf16.gmra.mxu0 %v57
    %v571 = vpop.f32.mrf.mxu0
    %v572 = vadd.f32 %v511, %v571
    %v573 = vpop.f32.mrf.mxu0
    %574 = vdwg.mxu0
    %s575 = scalar_lea.vmem %s5, 2
    %v576 = vld [vmem:[%s575] sm:$0x1]
    %v578 = vperm.slane %v576, 0
    %v580 = vadd.f32 %v572, %v578
    %v581 = vtanh.pop %v580
    %s582 = scalar_lea.vmem [#allocation2], 192
    %v583 = vld [vmem:[%s582] sm:$0xf]
    %v584 = vld [vmem:[%s582 + $0x4] sm:$0xf]
    %v585 = vld [vmem:[%s582 + $0x8] sm:$0xf]
    %v586 = vld [vmem:[%s582 + $0xc] sm:$0xf]
    %v587 = vld [vmem:[%s582 + $0x10] sm:$0xf]
    %v588 = vld [vmem:[%s582 + $0x14] sm:$0xf]
    %v589 = vld [vmem:[%s582 + $0x18] sm:$0xf]
    %v590 = vld [vmem:[%s582 + $0x1c] sm:$0xf]
    %v591 = vld [vmem:[%s582 + $0x20] sm:$0xf]
    %v592 = vld [vmem:[%s582 + $0x24] sm:$0xf]
    %v593 = vld [vmem:[%s582 + $0x28] sm:$0xf]
    %v594 = vld [vmem:[%s582 + $0x2c] sm:$0xf]
    %v595 = vld [vmem:[%s582 + $0x30] sm:$0xf]
    %v596 = vld [vmem:[%s582 + $0x34] sm:$0xf]
    %v597 = vld [vmem:[%s582 + $0x38] sm:$0xf]
    %v598 = vld [vmem:[%s582 + $0x3c] sm:$0xf]
    %s599 = scalar_lea.vmem [#allocation4], 192
    %v600 = vld [vmem:[%s599] sm:$0xf]
    %v601 = vld [vmem:[%s599 + $0x4] sm:$0xf]
    %v602 = vld [vmem:[%s599 + $0x8] sm:$0xf]
    %v603 = vld [vmem:[%s599 + $0xc] sm:$0xf]
    %v604 = vld [vmem:[%s599 + $0x10] sm:$0xf]
    %v605 = vld [vmem:[%s599 + $0x14] sm:$0xf]
    %v606 = vld [vmem:[%s599 + $0x18] sm:$0xf]
    %v607 = vld [vmem:[%s599 + $0x1c] sm:$0xf]
    %v608 = vld [vmem:[%s599 + $0x20] sm:$0xf]
    %v609 = vld [vmem:[%s599 + $0x24] sm:$0xf]
    %v610 = vld [vmem:[%s599 + $0x28] sm:$0xf]
    %v611 = vld [vmem:[%s599 + $0x2c] sm:$0xf]
    %v612 = vld [vmem:[%s599 + $0x30] sm:$0xf]
    %v613 = vld [vmem:[%s599 + $0x34] sm:$0xf]
    %v614 = vld [vmem:[%s599 + $0x38] sm:$0xf]
    %v615 = vld [vmem:[%s599 + $0x3c] sm:$0xf]
    %v632 = vunpack.c.l.b16 %v600
    %v633 = vunpack.c.l.b16 %v601
    %v634 = vunpack.c.l.b16 %v602
    %v635 = vunpack.c.l.b16 %v603
    %v636 = vunpack.c.l.b16 %v604
    %v637 = vunpack.c.l.b16 %v605
    %v638 = vunpack.c.l.b16 %v606
    %v639 = vunpack.c.l.b16 %v607
    %v640 = vunpack.c.l.b16 %v608
    %v641 = vunpack.c.l.b16 %v609
    %v642 = vunpack.c.l.b16 %v610
    %v643 = vunpack.c.l.b16 %v611
    %v644 = vunpack.c.l.b16 %v612
    %v645 = vunpack.c.l.b16 %v613
    %v646 = vunpack.c.l.b16 %v614
    %v647 = vunpack.c.l.b16 %v615
    %v648 = vpack.c.b16 %v633, %v632
    %v649 = vpack.c.b16 %v635, %v634
    %v650 = vpack.c.b16 %v637, %v636
    %v651 = vpack.c.b16 %v639, %v638
    %v652 = vpack.c.b16 %v641, %v640
    %v653 = vpack.c.b16 %v643, %v642
    %v654 = vpack.c.b16 %v645, %v644
    %v655 = vpack.c.b16 %v647, %v646
    %664 = vmatpush.bf16.msra.mxu0 %v655
    %665 = vmatpush.bf16.msra.mxu0 %v654
    %666 = vmatpush.bf16.msra.mxu0 %v653
    %667 = vmatpush.bf16.msra.mxu0 %v652
    %668 = vmatpush.bf16.msra.mxu0 %v651
    %669 = vmatpush.bf16.msra.mxu0 %v650
    %670 = vmatpush.bf16.msra.mxu0 %v649
    %671 = vmatpush.bf16.msra.mxu0 %v648
    %672 = vmatmul.bf16.gmra.mxu0 %v59
    %v673 = vpop.f32.mrf.mxu0
    %v674 = vadd.f32 0.0, %v673
    %v675 = vpop.f32.mrf.mxu0
    %676 = vdwg.mxu0
    %v693 = vunpack.c.l.b16 %v583
    %v694 = vunpack.c.l.b16 %v584
    %v695 = vunpack.c.l.b16 %v585
    %v696 = vunpack.c.l.b16 %v586
    %v697 = vunpack.c.l.b16 %v587
    %v698 = vunpack.c.l.b16 %v588
    %v699 = vunpack.c.l.b16 %v589
    %v700 = vunpack.c.l.b16 %v590
    %v701 = vunpack.c.l.b16 %v591
    %v702 = vunpack.c.l.b16 %v592
    %v703 = vunpack.c.l.b16 %v593
    %v704 = vunpack.c.l.b16 %v594
    %v705 = vunpack.c.l.b16 %v595
    %v706 = vunpack.c.l.b16 %v596
    %v707 = vunpack.c.l.b16 %v597
    %v708 = vunpack.c.l.b16 %v598
    %v709 = vpack.c.b16 %v694, %v693
    %v710 = vpack.c.b16 %v696, %v695
    %v711 = vpack.c.b16 %v698, %v697
    %v712 = vpack.c.b16 %v700, %v699
    %v713 = vpack.c.b16 %v702, %v701
    %v714 = vpack.c.b16 %v704, %v703
    %v715 = vpack.c.b16 %v706, %v705
    %v716 = vpack.c.b16 %v708, %v707
    %725 = vmatpush.bf16.msra.mxu0 %v716
    %726 = vmatpush.bf16.msra.mxu0 %v715
    %727 = vmatpush.bf16.msra.mxu0 %v714
    %728 = vmatpush.bf16.msra.mxu0 %v713
    %729 = vmatpush.bf16.msra.mxu0 %v712
    %730 = vmatpush.bf16.msra.mxu0 %v711
    %731 = vmatpush.bf16.msra.mxu0 %v710
    %732 = vmatpush.bf16.msra.mxu0 %v709
    %733 = vmatmul.bf16.gmra.mxu0 %v57
    %v734 = vpop.f32.mrf.mxu0
    %v735 = vadd.f32 %v674, %v734
    %v736 = vpop.f32.mrf.mxu0
    %737 = vdwg.mxu0
    %s738 = scalar_lea.vmem %s5, 3
    %v739 = vld [vmem:[%s738] sm:$0x1]
    %v741 = vperm.slane %v739, 0
    %v743 = vadd.f32 %v735, %v741
    %v744 = vxor.u32 %v743, 2147483648
    %v745 = vmul.f32 %v744, 1.442695
    %v746 = vpow.pop %v745
    %v747 = vadd.f32 %v746, 1.0
    %v748 = vrcp.pop %v747
    %v749 = vmul.f32 %v747, %v748
    %v750 = vsub.f32 1.0, %v749
    %v751 = vmul.f32 %v748, %v750
    %v752 = vadd.f32 %v748, %v751
    %vm753 = vweird.f32 %v747
    %vm754 = vweird.f32 %v748
    %vm755 = vmor %vm753, %vm754
    %v756 = vsel %vm755, %v748, %v752
    %v757 = vand.u32 2147483647, %v747
    %vm758 = vcmp.eq.f32.partialorder %v757, 8.507059e+37
    %v759 = vand.u32 %v747, 2147483648
    %v760 = vor.u32 1.1754944e-38, %v759
    %v761 = vsel %vm758, %v760, %v756
    %v762 = vmul.f32 1.0, %v761
    %v763 = vld [vmem:[%s2] sm:$0xff]
    %v764 = vmul.f32 %v418, %v763
    %v765 = vmul.f32 %v237, %v581
    %v766 = vadd.f32 %v764, %v765
    %v767 = vtanh.pop %v766
    %v768 = vmul.f32 %v762, %v767
    %769 = vst [vmem:[%s7] sm:$0xff] %v766
    %770 = vst [vmem:[%s6] sm:$0xff] %v768
    // Predicated region
    $region34: #{_lstm_step_pallas.1} parent=1 // pred_check
      _
    $region35: #{_lstm_step_pallas.1} parent=1 // pred_check_branch
      %772 = sbr.rel (0) target = $region37
    $region36: #{_lstm_step_pallas.1} parent=1 // pred_region
      _
    $region37: #{_lstm_step_pallas.1} parent=1 // pred_fallthru
      _
    // Predicated region
    $region38: #{_lstm_step_pallas.1} parent=1 // pred_check
      _
    $region39: #{_lstm_step_pallas.1} parent=1 // pred_check_branch
      %774 = sbr.rel (0) target = $region41
    $region40: #{_lstm_step_pallas.1} parent=1 // pred_region
      _
    $region41: #{_lstm_step_pallas.1} parent=1 // pred_fallthru
      _
    // Predicated region
    $region42: #{_lstm_step_pallas.1} parent=1 // pred_check
      _
    $region43: #{_lstm_step_pallas.1} parent=1 // pred_check_branch
      %776 = sbr.rel (0) target = $region45
    $region44: #{_lstm_step_pallas.1} parent=1 // pred_region
      _
    $region45: #{_lstm_step_pallas.1} parent=1 // pred_fallthru
      _
    // Predicated region
    $region46: #{_lstm_step_pallas.1} parent=1 // pred_check
      _
    $region47: #{_lstm_step_pallas.1} parent=1 // pred_check_branch
      %778 = sbr.rel (0) target = $region49
    $region48: #{_lstm_step_pallas.1} parent=1 // pred_region
      _
    $region49: #{_lstm_step_pallas.1} parent=1 // pred_fallthru
      _
    %779 = vsyncpa [#allocation3], 1
    %780 = vsyncpa [#allocation5], 1

</llo_original>
